<compile_context>
chip_gen: v6e
topology: v6e:2x2x1
jax: 0.10.0
libtpu: 0.0.40
codegen_flags: <defaults>
</compile_context>

<pallas_src>
import functools

import jax
import jax.numpy as jnp
from jax import lax
from jax.experimental import pallas as pl
from jax.experimental.pallas import tpu as pltpu


# ----------------------------- config ---------------------------------------
class Cfg:
    vocab_size = 128
    hidden_size = 64
    intermediate_size = 128
    num_attention_heads = 4
    num_key_value_heads = 2
    num_hidden_layers = 2
    num_experts = 4
    topk = 2
    adapter_dim = 16
    moe_scaling = 1.0
    rms_norm_eps = 1e-6
    rope_theta = 10000.0


def _default_vmem_limit():
    # 64 MiB on 128-MiB-VMEM chips (v5e/v6e), 32 MiB on v7x (64 MiB physical).
    try:
        cap = pltpu.get_tpu_info().vmem_capacity_bytes
    except Exception:
        cap = 128 * 1024 * 1024
    return int(min(64 * 1024 * 1024, cap // 2))


_VMEM_LIMIT = _default_vmem_limit()
_SMALL_VMEM = _VMEM_LIMIT < 48 * 1024 * 1024   # v7x: shrink fused-norm row tile


def _pick(dim, target, align):
    """Largest tile <= target that divides dim and is a multiple of `align`;
    falls back to the full dim (a full-extent block is always legal)."""
    t = min(dim, target)
    t -= t % align
    while t >= align:
        if dim % t == 0:
            return t
        t -= align
    return dim


# ----------------------------- in-kernel math --------------------------------
def _erf(x):
    # Abramowitz-Stegun 7.1.26 polynomial erf (max abs err ~1.5e-7); built from
    # ops with guaranteed Mosaic lowerings.
    a1, a2, a3, a4, a5 = (0.254829592, -0.284496736, 1.421413741,
                          -1.453152027, 1.061405429)
    p = 0.3275911
    sgn = jnp.sign(x)
    ax = jnp.abs(x)
    t = 1.0 / (1.0 + p * ax)
    poly = ((((a5 * t + a4) * t + a3) * t + a2) * t + a1) * t
    return sgn * (1.0 - poly * jnp.exp(-ax * ax))


def _gelu_exact(x):
    # nn.GELU() default = exact erf GELU.
    return 0.5 * x * (1.0 + _erf(x * 0.7071067811865476))


# ----------------------------- tiled matmul (bf16 out) ------------------------
def _matmul_kernel(x_ref, w_ref, o_ref, acc_ref):
    kk = pl.program_id(2)

    @pl.when(kk == 0)
    def _():
        acc_ref[...] = jnp.zeros(acc_ref.shape, acc_ref.dtype)

    acc_ref[...] += jnp.dot(x_ref[...].astype(jnp.bfloat16), w_ref[...],
                            preferred_element_type=jnp.float32)

    @pl.when(kk == pl.num_programs(2) - 1)
    def _():
        o_ref[...] = acc_ref[...].astype(o_ref.dtype)


def matmul(x, w_bf16, tm=512, tn=1024, tk=512):
    T, K = x.shape
    N = w_bf16.shape[1]
    tm, tn, tk = _pick(T, tm, 8), _pick(N, tn, 128), _pick(K, tk, 128)
    return pl.pallas_call(
        _matmul_kernel,
        grid=(T // tm, N // tn, K // tk),
        in_specs=[pl.BlockSpec((tm, tk), lambda i, j, kk: (i, kk)),
                  pl.BlockSpec((tk, tn), lambda i, j, kk: (kk, j))],
        out_specs=pl.BlockSpec((tm, tn), lambda i, j, kk: (i, j)),
        out_shape=jax.ShapeDtypeStruct((T, N), jnp.bfloat16),
        scratch_shapes=[pltpu.VMEM((tm, tn), jnp.float32)],
        compiler_params=pltpu.CompilerParams(
            dimension_semantics=("parallel", "parallel", "arbitrary"),
            vmem_limit_bytes=_VMEM_LIMIT),
    )(x, w_bf16)


# ------------------- fused (add+)RMSNorm -> matmul (QKV) ----------------------
def _fused_qkv_kernel(eps, has_res, *refs):
    if has_res:
        x_ref, r_ref, g_ref, w_ref, o_ref, res_ref, norm_sc = refs
    else:
        x_ref, g_ref, w_ref, o_ref, res_ref, norm_sc = refs
        r_ref = None
    j = pl.program_id(1)

    # Norm + residual add computed once per row tile, reused for every j.
    @pl.when(j == 0)
    def _():
        s = x_ref[...].astype(jnp.float32)
        if has_res:
            s = s + r_ref[...]
        res_ref[...] = s
        var = jnp.mean(s * s, axis=-1, keepdims=True)
        norm_sc[...] = (s * lax.rsqrt(var + eps) * g_ref[...]).astype(jnp.bfloat16)

    o_ref[...] = jnp.dot(norm_sc[...], w_ref[...],
                         preferred_element_type=jnp.float32).astype(jnp.bfloat16)


def fused_add_rmsnorm_matmul(x, residual, gamma, w_bf16, eps, tm=None, tn=512):
    # K (= hidden) stays untiled: RMSNorm needs the full row; hidden fits VMEM.
    T, H = x.shape
    N = w_bf16.shape[1]
    if tm is None:
        tm = 128 if _SMALL_VMEM else 256
    tm, tn = _pick(T, tm, 8), _pick(N, tn, 128)
    has_res = residual is not None
    inputs = [x] + ([residual] if has_res else []) + [gamma.reshape(1, H), w_bf16]
    in_specs = [pl.BlockSpec((tm, H), lambda i, j: (i, 0))]
    if has_res:
        in_specs.append(pl.BlockSpec((tm, H), lambda i, j: (i, 0)))
    in_specs += [pl.BlockSpec((1, H), lambda i, j: (0, 0)),
                 pl.BlockSpec((H, tn), lambda i, j: (0, j))]
    out, res = pl.pallas_call(
        functools.partial(_fused_qkv_kernel, eps, has_res),
        grid=(T // tm, N // tn),
        in_specs=in_specs,
        out_specs=(pl.BlockSpec((tm, tn), lambda i, j: (i, j)),
                   pl.BlockSpec((tm, H), lambda i, j: (i, 0))),
        out_shape=(jax.ShapeDtypeStruct((T, N), jnp.bfloat16),
                   jax.ShapeDtypeStruct((T, H), jnp.float32)),
        scratch_shapes=[pltpu.VMEM((tm, H), jnp.bfloat16)],
        compiler_params=pltpu.CompilerParams(
            dimension_semantics=("parallel", "arbitrary"),
            vmem_limit_bytes=_VMEM_LIMIT),
    )(*inputs)
    return out, res


# ---------- fused add+RMSNorm -> gate/up proj -> SiLU*mul, + router ----------
def _fused_gateup_kernel(eps, x_ref, r_ref, g_ref, wg_ref, wu_ref, wr_ref,
                         h_ref, res_ref, rt_ref, norm_sc):
    j = pl.program_id(1)

    @pl.when(j == 0)
    def _():
        s = x_ref[...].astype(jnp.float32) + r_ref[...]
        res_ref[...] = s
        var = jnp.mean(s * s, axis=-1, keepdims=True)
        nb = (s * lax.rsqrt(var + eps) * g_ref[...]).astype(jnp.bfloat16)
        norm_sc[...] = nb
        # Router shares the same normed input; tiny matmul done once per row tile.
        rt_ref[...] = jnp.dot(nb, wr_ref[...], preferred_element_type=jnp.float32)

    nx = norm_sc[...]
    g = jnp.dot(nx, wg_ref[...], preferred_element_type=jnp.float32)
    u = jnp.dot(nx, wu_ref[...], preferred_element_type=jnp.float32)
    h_ref[...] = (jax.nn.silu(g) * u).astype(jnp.bfloat16)


def fused_add_rmsnorm_gateup(x, residual, gamma, w_gate, w_up, w_router, eps,
                             tm=None, tn=512):
    T, H = x.shape
    I = w_gate.shape[1]
    E = w_router.shape[1]
    if tm is None:
        tm = 128 if _SMALL_VMEM else 256
    tm, tn = _pick(T, tm, 8), _pick(I, tn, 128)
    h, res, router = pl.pallas_call(
        functools.partial(_fused_gateup_kernel, eps),
        grid=(T // tm, I // tn),
        in_specs=[pl.BlockSpec((tm, H), lambda i, j: (i, 0)),
                  pl.BlockSpec((tm, H), lambda i, j: (i, 0)),
                  pl.BlockSpec((1, H), lambda i, j: (0, 0)),
                  pl.BlockSpec((H, tn), lambda i, j: (0, j)),
                  pl.BlockSpec((H, tn), lambda i, j: (0, j)),
                  pl.BlockSpec((H, E), lambda i, j: (0, 0))],
        out_specs=(pl.BlockSpec((tm, tn), lambda i, j: (i, j)),
                   pl.BlockSpec((tm, H), lambda i, j: (i, 0)),
                   pl.BlockSpec((tm, E), lambda i, j: (i, 0))),
        out_shape=(jax.ShapeDtypeStruct((T, I), jnp.bfloat16),
                   jax.ShapeDtypeStruct((T, H), jnp.float32),
                   jax.ShapeDtypeStruct((T, E), jnp.float32)),
        scratch_shapes=[pltpu.VMEM((tm, H), jnp.bfloat16)],
        compiler_params=pltpu.CompilerParams(
            dimension_semantics=("parallel", "arbitrary"),
            vmem_limit_bytes=_VMEM_LIMIT),
    )(x, residual, gamma.reshape(1, H), w_gate, w_up, w_router)
    return h, res, router


# ------------------------------ final RMSNorm --------------------------------
def _final_add_rmsnorm_kernel(eps, x_ref, r_ref, g_ref, o_ref):
    s = x_ref[...].astype(jnp.float32) + r_ref[...]
    var = jnp.mean(s * s, axis=-1, keepdims=True)
    o_ref[...] = s * lax.rsqrt(var + eps) * g_ref[...]


def final_add_rmsnorm(x, residual, gamma, eps, tm=256):
    T, H = x.shape
    tm = _pick(T, tm, 8)
    return pl.pallas_call(
        functools.partial(_final_add_rmsnorm_kernel, eps),
        grid=(T // tm,),
        in_specs=[pl.BlockSpec((tm, H), lambda i: (i, 0)),
                  pl.BlockSpec((tm, H), lambda i: (i, 0)),
                  pl.BlockSpec((1, H), lambda i: (0, 0))],
        out_specs=pl.BlockSpec((tm, H), lambda i: (i, 0)),
        out_shape=jax.ShapeDtypeStruct((T, H), jnp.float32),
        compiler_params=pltpu.CompilerParams(
            dimension_semantics=("parallel",),
            vmem_limit_bytes=_VMEM_LIMIT),
    )(x, residual, gamma.reshape(1, H))


# --------------------------- flash attention (GQA) ---------------------------
def _flash_kernel(scale, tq, tk, q_ref, k_ref, v_ref, o_ref, m_sc, l_sc, acc_sc):
    qi, ki = pl.program_id(1), pl.program_id(2)

    @pl.when(ki == 0)
    def _():
        m_sc[...] = jnp.full(m_sc.shape, -jnp.inf, m_sc.dtype)
        l_sc[...] = jnp.zeros(l_sc.shape, l_sc.dtype)
        acc_sc[...] = jnp.zeros(acc_sc.shape, acc_sc.dtype)

    # Skip kv tiles that are entirely above the causal diagonal.
    # TODO(synk): the skipped tiles' K/V blocks are still DMA'd by the
    # BlockSpec; a scalar-prefetched lower-triangle grid would avoid that.
    @pl.when(ki * tk <= qi * tq + (tq - 1))
    def _():
        q = q_ref[...] * scale                 # (rep, tq, D), bf16; scale on q
        k = k_ref[0]                           # (tk, D), bf16
        s = jnp.einsum('hqd,kd->hqk', q, k,
                       preferred_element_type=jnp.float32)
        row = qi * tq + lax.broadcasted_iota(jnp.int32, s.shape, 1)
        col = ki * tk + lax.broadcasted_iota(jnp.int32, s.shape, 2)
        s = jnp.where(row >= col, s, -1e30)
        m_prev = m_sc[...]
        m_new = jnp.maximum(m_prev, jnp.max(s, axis=-1, keepdims=True))
        alpha = jnp.exp(m_prev - m_new)
        p = jnp.exp(s - m_new)
        l_sc[...] = alpha * l_sc[...] + jnp.sum(p, axis=-1, keepdims=True)
        acc_sc[...] = alpha * acc_sc[...] + jnp.einsum(
            'hqk,kd->hqd', p.astype(jnp.bfloat16), v_ref[0],
            preferred_element_type=jnp.float32)
        m_sc[...] = m_new

    @pl.when(ki == pl.num_programs(2) - 1)
    def _():
        o_ref[...] = (acc_sc[...] * pl.reciprocal(l_sc[...], approx=True)
                      ).astype(o_ref.dtype)


def flash_attention(q, k, v, num_q_heads, num_kv_heads, scale, tile=128):
    # q: [B*NH, S, D] (heads of one kv group are contiguous); k/v: [B*NKV, S, D].
    # Grid over kv groups so each K/V tile is DMA'd once per group (rep x reuse).
    GQ, S, D = q.shape
    G = k.shape[0]
    rep = num_q_heads // num_kv_heads
    tq = _pick(S, tile, 8)
    tk = _pick(S, tile, 8)
    return pl.pallas_call(
        functools.partial(_flash_kernel, scale, tq, tk),
        grid=(G, S // tq, S // tk),
        in_specs=[pl.BlockSpec((rep, tq, D), lambda g, qi, ki: (g, qi, 0)),
                  pl.BlockSpec((1, tk, D), lambda g, qi, ki: (g, ki, 0)),
                  pl.BlockSpec((1, tk, D), lambda g, qi, ki: (g, ki, 0))],
        out_specs=pl.BlockSpec((rep, tq, D), lambda g, qi, ki: (g, qi, 0)),
        out_shape=jax.ShapeDtypeStruct((GQ, S, D), jnp.bfloat16),
        scratch_shapes=[pltpu.VMEM((rep, tq, 1), jnp.float32),
                        pltpu.VMEM((rep, tq, 1), jnp.float32),
                        pltpu.VMEM((rep, tq, D), jnp.float32)],
        compiler_params=pltpu.CompilerParams(
            dimension_semantics=("parallel", "parallel", "arbitrary"),
            vmem_limit_bytes=_VMEM_LIMIT),
    )(q, k, v)


# ------------------------------- MoE adapter ---------------------------------
# Experts are packed along the lane axis: wd_all [H, E*A], wu_all [E*A, H].
# Kernel 1: h = gelu(down @ wd_all) * w_exp        (w_exp = routing weight * scaling,
#                                                    broadcast over each expert's A cols)
# Kernel 2: out = down + h @ wu_all
def _adapter_down_kernel(x_ref, wd_ref, wexp_ref, o_ref, acc_ref):
    kk = pl.program_id(2)

    @pl.when(kk == 0)
    def _():
        acc_ref[...] = jnp.zeros(acc_ref.shape, acc_ref.dtype)

    acc_ref[...] += jnp.dot(x_ref[...].astype(jnp.bfloat16), wd_ref[...],
                            preferred_element_type=jnp.float32)

    @pl.when(kk == pl.num_programs(2) - 1)
    def _():
        o_ref[...] = (_gelu_exact(acc_ref[...]) * wexp_ref[...]).astype(o_ref.dtype)


def adapter_down(x, wd_all, w_exp, tm=512, tn=512, tk=512):
    T, H = x.shape
    EA = wd_all.shape[1]
    tm, tn, tk = _pick(T, tm, 8), _pick(EA, tn, 128), _pick(H, tk, 128)
    return pl.pallas_call(
        _adapter_down_kernel,
        grid=(T // tm, EA // tn, H // tk),
        in_specs=[pl.BlockSpec((tm, tk), lambda i, j, kk: (i, kk)),
                  pl.BlockSpec((tk, tn), lambda i, j, kk: (kk, j)),
                  pl.BlockSpec((tm, tn), lambda i, j, kk: (i, j))],
        out_specs=pl.BlockSpec((tm, tn), lambda i, j, kk: (i, j)),
        out_shape=jax.ShapeDtypeStruct((T, EA), jnp.bfloat16),
        scratch_shapes=[pltpu.VMEM((tm, tn), jnp.float32)],
        compiler_params=pltpu.CompilerParams(
            dimension_semantics=("parallel", "parallel", "arbitrary"),
            vmem_limit_bytes=_VMEM_LIMIT),
    )(x, wd_all, w_exp)


def _adapter_up_kernel(h_ref, wu_ref, base_ref, o_ref, acc_ref):
    kk = pl.program_id(2)

    @pl.when(kk == 0)
    def _():
        acc_ref[...] = jnp.zeros(acc_ref.shape, acc_ref.dtype)

    acc_ref[...] += jnp.dot(h_ref[...], wu_ref[...],
                            preferred_element_type=jnp.float32)

    @pl.when(kk == pl.num_programs(2) - 1)
    def _():
        o_ref[...] = (base_ref[...].astype(jnp.float32) + acc_ref[...]
                      ).astype(o_ref.dtype)


def adapter_up(h, wu_all, base, tm=512, tn=512, tk=512):
    T, EA = h.shape
    N = wu_all.shape[1]
    tm, tn, tk = _pick(T, tm, 8), _pick(N, tn, 128), _pick(EA, tk, 128)
    return pl.pallas_call(
        _adapter_up_kernel,
        grid=(T // tm, N // tn, EA // tk),
        in_specs=[pl.BlockSpec((tm, tk), lambda i, j, kk: (i, kk)),
                  pl.BlockSpec((tk, tn), lambda i, j, kk: (kk, j)),
                  pl.BlockSpec((tm, tn), lambda i, j, kk: (i, j))],
        out_specs=pl.BlockSpec((tm, tn), lambda i, j, kk: (i, j)),
        out_shape=jax.ShapeDtypeStruct((T, N), jnp.bfloat16),
        scratch_shapes=[pltpu.VMEM((tm, tn), jnp.float32)],
        compiler_params=pltpu.CompilerParams(
            dimension_semantics=("parallel", "parallel", "arbitrary"),
            vmem_limit_bytes=_VMEM_LIMIT),
    )(h, wu_all, base)


# ----------------------------- JAX glue --------------------------------------
def apply_rope(q, k, positions, head_dim, theta):
    # q: [B, S, NH, D], k: [B, S, NKV, D]; neox-style rotary (rotate halves).
    # TODO(synk): could be fused into the flash q/k prologue (pltpu.roll) to
    # save a q/k HBM round trip.
    d2 = head_dim // 2
    inv_freq = 1.0 / (theta ** (jnp.arange(d2, dtype=jnp.float32) * 2.0 / head_dim))
    freqs = positions.astype(jnp.float32)[:, None] * inv_freq[None, :]   # [S, d2]
    cos = jnp.cos(freqs)[None, :, None, :]
    sin = jnp.sin(freqs)[None, :, None, :]

    def rot(x):
        x = x.astype(jnp.float32)
        x1, x2 = x[..., :d2], x[..., d2:]
        return jnp.concatenate([x1 * cos - x2 * sin, x2 * cos + x1 * sin],
                               axis=-1).astype(jnp.bfloat16)

    return rot(q), rot(k)


def self_attention(qkv, positions, p, cfg, B, S):
    H = cfg.hidden_size
    NH, NKV = cfg.num_attention_heads, cfg.num_key_value_heads
    D = H // NH
    q = qkv[:, :NH * D].reshape(B, S, NH, D)
    k = qkv[:, NH * D:(NH + NKV) * D].reshape(B, S, NKV, D)
    v = qkv[:, (NH + NKV) * D:].reshape(B, S, NKV, D)
    q, k = apply_rope(q, k, positions, D, cfg.rope_theta)
    # TODO(synk): head split/transpose kept in XLA glue; could be folded into
    # the flash index maps to remove these HBM copies entirely.
    q = q.transpose(0, 2, 1, 3).reshape(B * NH, S, D)
    k = k.transpose(0, 2, 1, 3).reshape(B * NKV, S, D)
    v = v.transpose(0, 2, 1, 3).reshape(B * NKV, S, D)
    # TODO(synk): PagedAttention kv-cache paging / InputMetadata not modeled;
    # full causal prefill attention is used instead.
    o = flash_attention(q, k, v, NH, NKV, D ** -0.5)
    o = o.reshape(B, NH, S, D).transpose(0, 2, 1, 3).reshape(B * S, NH * D)
    return matmul(o, p["o_w"])


def compute_expert_weights(router_logits, topk, num_experts):
    # TODO(synk): softmax/top-k routing done in plain JAX (lax.top_k), not in-kernel.
    rw = jax.nn.softmax(router_logits.astype(jnp.float32), axis=-1)   # [T, E]
    top_w, top_idx = lax.top_k(rw, topk)
    top_w = top_w / jnp.sum(top_w, axis=-1, keepdims=True)
    onehot = jax.nn.one_hot(top_idx, num_experts, dtype=jnp.float32)  # [T, k, E]
    return jnp.einsum("tk,tke->te", top_w, onehot)                    # [T, E]


def decoder_layer(hidden, residual, positions, p, cfg, B, S):
    E, A = cfg.num_experts, cfg.adapter_dim
    # input_layernorm (+ residual add) fused into the QKV projection.
    qkv, residual = fused_add_rmsnorm_matmul(
        hidden, residual, p["input_ln"], p["attn"]["qkv_w"], cfg.rms_norm_eps)
    attn_out = self_attention(qkv, positions, p["attn"], cfg, B, S)
    # post_attention_layernorm + gate/up proj + SiLU*mul + router, one kernel.
    h, residual, router_logits = fused_add_rmsnorm_gateup(
        attn_out, residual, p["post_ln"], p["mlp"]["gate_w"], p["mlp"]["up_w"],
        p["mlp"]["router_w"], cfg.rms_norm_eps)
    down = matmul(h, p["mlp"]["down_w"])                              # [T, H] bf16
    dense_w = compute_expert_weights(router_logits, cfg.topk, E)      # [T, E]
    # Per-token routing weight broadcast over each expert's A adapter columns
    # (moe_scaling folded in).
    w_exp = jnp.repeat(dense_w * cfg.moe_scaling, A, axis=1)          # [T, E*A]
    h1 = adapter_down(down, p["mlp"]["adapter_down_w"], w_exp)        # [T, E*A]
    out = adapter_up(h1, p["mlp"]["adapter_up_w"], down)              # [T, H]
    return out, residual


def sparsetral_model(input_ids, positions, params, cfg):
    B, S = input_ids.shape
    # TODO(synk): vocab-embedding gather kept in plain JAX (XLA gather).
    hidden = jnp.take(params["embed"], input_ids.reshape(-1), axis=0)  # [T, H] bf16
    residual = None
    for p in params["layers"]:
        hidden, residual = decoder_layer(hidden, residual, positions, p, cfg, B, S)
    hidden = final_add_rmsnorm(hidden, residual, params["norm"], cfg.rms_norm_eps)
    return hidden.reshape(B, S, cfg.hidden_size)


# ----------------------------- params ---------------------------------------
def init_params(cfg, key):
    keys = iter(jax.random.split(key, 256))

    def w(shape, scale=0.02):
        return jax.random.normal(next(keys), shape, jnp.float32) * scale

    def bf(a):
        return a.astype(jnp.bfloat16)

    H, I = cfg.hidden_size, cfg.intermediate_size
    NH, NKV = cfg.num_attention_heads, cfg.num_key_value_heads
    D = H // NH
    A, E = cfg.adapter_dim, cfg.num_experts

    params = {
        "embed": bf(w((cfg.vocab_size, H), 0.05)),
        "norm": jnp.ones((H,), jnp.float32),
        "layers": [],
    }
    for _ in range(cfg.num_hidden_layers):
        params["layers"].append({
            "input_ln": jnp.ones((H,), jnp.float32) + w((H,), 0.01),
            "post_ln": jnp.ones((H,), jnp.float32) + w((H,), 0.01),
            "attn": {
                "qkv_w": bf(w((H, (NH + 2 * NKV) * D))),
                "o_w": bf(w((NH * D, H))),
            },
            "mlp": {
                "gate_w": bf(w((H, I))),
                "up_w": bf(w((H, I))),
                "router_w": bf(w((H, E))),
                "down_w": bf(w((I, H))),
                # Expert-packed adapter weights: expert e owns columns/rows
                # [e*A, (e+1)*A) of the lane axis.
                "adapter_down_w": bf(w((H, E * A))),
                "adapter_up_w": bf(w((E * A, H))),
            },
        })
    return params


# ----------------------------- main ------------------------------------------
if __name__ == "__main__":
    cfg = Cfg()
    key = jax.random.PRNGKey(0)
    kp, ki = jax.random.split(key)
    params = init_params(cfg, kp)

    B, S = 2, 8
    input_ids = jax.random.randint(ki, (B, S), 0, cfg.vocab_size, dtype=jnp.int32)
    positions = jnp.arange(S, dtype=jnp.int32)

    out = sparsetral_model(input_ids, positions, params, cfg)
    jax.block_until_ready(out)
    assert out.shape == (B, S, cfg.hidden_size)
    assert bool(jnp.all(jnp.isfinite(out)))
    print("KERNEL_OK")
</pallas_src>

<mosaic_0001>
module attributes {stable_mosaic.version = 11 : i64} {
  func.func @_fused_qkv_kernel(%arg0: i32, %arg1: i32, %arg2: memref<16x64xbf16, #tpu.memory_space<vmem>>, %arg3: memref<1x64xf32, #tpu.memory_space<vmem>>, %arg4: memref<64x128xbf16, #tpu.memory_space<vmem>>, %arg5: memref<16x128xbf16, #tpu.memory_space<vmem>>, %arg6: memref<16x64xf32, #tpu.memory_space<vmem>>, %arg7: memref<16x64xbf16, #tpu.memory_space<vmem>>) attributes {dimension_semantics = [#tpu.dimension_semantics<parallel>, #tpu.dimension_semantics<arbitrary>], iteration_bounds = array<i64: 1, 1>, scalar_prefetch = 0 : i64, scratch_operands = 1 : i64, tpu.core_type = #tpu.core_type<tc>, window_params = [{transform_indices = @transform_0, window_bounds = array<i64: 16, 64>}, {pipeline_mode = #tpu.pipeline_mode<synchronous>, transform_indices = @transform_1, window_bounds = array<i64: 1, 64>}, {transform_indices = @transform_2, window_bounds = array<i64: 64, 128>}, {transform_indices = @transform_3, window_bounds = array<i64: 16, 128>}, {transform_indices = @transform_4, window_bounds = array<i64: 16, 64>}]} {
    %c0_i32 = arith.constant 0 : i32
    %0 = arith.cmpi eq, %arg1, %c0_i32 : i32
    %1 = arith.extui %0 : i1 to i32
    %c0_i32_0 = arith.constant 0 : i32
    %2 = arith.cmpi ne, %1, %c0_i32_0 : i32
    scf.if %2 {
      %c0_6 = arith.constant 0 : index
      %c0_7 = arith.constant 0 : index
      %8 = vector.load %arg2[%c0_6, %c0_7] : memref<16x64xbf16, #tpu.memory_space<vmem>>, vector<16x64xbf16>
      %9 = arith.extf %8 : vector<16x64xbf16> to vector<16x64xf32>
      %c0_8 = arith.constant 0 : index
      %c0_9 = arith.constant 0 : index
      %10 = vector.load %arg6[%c0_8, %c0_9] : memref<16x64xf32, #tpu.memory_space<vmem>>, vector<16x64xf32>
      tpu.vector_store %arg6[%c0_8, %c0_9], %9 {strides = array<i32>} : memref<16x64xf32, #tpu.memory_space<vmem>>, vector<16x64xf32>,
      %11 = arith.mulf %9, %9 : vector<16x64xf32>
      %cst_10 = arith.constant dense<0.000000e+00> : vector<16xf32>
      %12 = vector.multi_reduction <add>, %11, %cst_10 [1] : vector<16x64xf32> to vector<16xf32>
      %13 = vector.shape_cast %12 : vector<16xf32> to vector<16x1xf32>
      %cst_11 = arith.constant 6.400000e+01 : f32
      %14 = vector.broadcast %cst_11 : f32 to vector<16x1xf32>
      %15 = arith.divf %13, %14 : vector<16x1xf32>
      %cst_12 = arith.constant 9.99999997E-7 : f32
      %16 = vector.broadcast %cst_12 : f32 to vector<16x1xf32>
      %17 = arith.addf %15, %16 : vector<16x1xf32>
      %18 = math.rsqrt %17 : vector<16x1xf32>
      %19 = vector.broadcast %18 : vector<16x1xf32> to vector<16x64xf32>
      %20 = arith.mulf %9, %19 : vector<16x64xf32>
      %c0_13 = arith.constant 0 : index
      %c0_14 = arith.constant 0 : index
      %21 = vector.load %arg3[%c0_13, %c0_14] : memref<1x64xf32, #tpu.memory_space<vmem>>, vector<1x64xf32>
      %22 = vector.broadcast %21 : vector<1x64xf32> to vector<16x64xf32>
      %23 = arith.mulf %20, %22 : vector<16x64xf32>
      %24 = arith.truncf %23 : vector<16x64xf32> to vector<16x64xbf16>
      %c0_15 = arith.constant 0 : index
      %c0_16 = arith.constant 0 : index
      %25 = vector.load %arg7[%c0_15, %c0_16] : memref<16x64xbf16, #tpu.memory_space<vmem>>, vector<16x64xbf16>
      tpu.vector_store %arg7[%c0_15, %c0_16], %24 {strides = array<i32>} : memref<16x64xbf16, #tpu.memory_space<vmem>>, vector<16x64xbf16>,
    } else {
    }
    %c0 = arith.constant 0 : index
    %c0_1 = arith.constant 0 : index
    %3 = vector.load %arg7[%c0, %c0_1] : memref<16x64xbf16, #tpu.memory_space<vmem>>, vector<16x64xbf16>
    %c0_2 = arith.constant 0 : index
    %c0_3 = arith.constant 0 : index
    %4 = vector.load %arg4[%c0_2, %c0_3] : memref<64x128xbf16, #tpu.memory_space<vmem>>, vector<64x128xbf16>
    %cst = arith.constant dense<0.000000e+00> : vector<16x128xf32>
    %5 = tpu.matmul %3, %4, %cst {dimension_numbers = #tpu.dot_dimension_numbers<[1], [0], [0], [1], [0, 0, 1, 1], [], []>} : vector<16x64xbf16>, vector<64x128xbf16>, vector<16x128xf32> -> vector<16x128xf32>
    %6 = arith.truncf %5 : vector<16x128xf32> to vector<16x128xbf16>
    %c0_4 = arith.constant 0 : index
    %c0_5 = arith.constant 0 : index
    %7 = vector.load %arg5[%c0_4, %c0_5] : memref<16x128xbf16, #tpu.memory_space<vmem>>, vector<16x128xbf16>
    tpu.vector_store %arg5[%c0_4, %c0_5], %6 {strides = array<i32>} : memref<16x128xbf16, #tpu.memory_space<vmem>>, vector<16x128xbf16>,
    return
  }
  func.func @transform_0(%arg0: i32, %arg1: i32) -> (i32, i32) {
    %c0_i32 = arith.constant 0 : i32
    %c0_i32_0 = arith.constant 0 : i32
    return %arg0, %c0_i32 : i32, i32
  }
  func.func @transform_1(%arg0: i32, %arg1: i32) -> (i32, i32) {
    %c0_i32 = arith.constant 0 : i32
    %c0_i32_0 = arith.constant 0 : i32
    %c0_i32_1 = arith.constant 0 : i32
    return %c0_i32, %c0_i32_0 : i32, i32
  }
  func.func @transform_2(%arg0: i32, %arg1: i32) -> (i32, i32) {
    %c0_i32 = arith.constant 0 : i32
    %c0_i32_0 = arith.constant 0 : i32
    return %c0_i32, %arg1 : i32, i32
  }
  func.func @transform_3(%arg0: i32, %arg1: i32) -> (i32, i32) {
    %c0_i32 = arith.constant 0 : i32
    return %arg0, %arg1 : i32, i32
  }
  func.func @transform_4(%arg0: i32, %arg1: i32) -> (i32, i32) {
    %c0_i32 = arith.constant 0 : i32
    %c0_i32_0 = arith.constant 0 : i32
    return %arg0, %c0_i32 : i32, i32
  }
}

</mosaic_0001>

<llo_original>
// kernel: tpu_custom_call.1
$region0: #{tpu_custom_call.1}
  #allocation0 [shape = 'u32[]', space=smem, size = 0x4, offset = 0x4, fixed_abs, tag = 'smem constant byte address 0x4 - core index']
  #allocation1 [shape = 'u32[144,128]{1,0:T(1,128)}', space=vmem, size = 0x12000, scoped, tag = 'internal scratch']
  #allocation2 [shape = 'bf16[16,64]{1,0:T(8,128)(2,1)}', space=vmem, size = 0x1000, scoped, tag = 'scratch operand']
  %s0 = inlined_call_operand.hbm [shape: bf16[16,64], index: 0, kind: input, shape index: {}]
  %s1 = inlined_call_operand.vmem [shape: f32[1,64], index: 1, kind: input, shape index: {}]
  %s2 = inlined_call_operand.hbm [shape: bf16[64,128], index: 2, kind: input, shape index: {}]
  %s3 = inlined_call_operand.hbm [shape: bf16[16,128], index: 3, kind: output, shape index: {0}]
  %s4 = inlined_call_operand.hbm [shape: f32[16,64], index: 4, kind: output, shape index: {1}]
  %5 = xla_tuple %s3, %s4
  %s6 = sld [smem:[#allocation0]]
  $region42: #{tpu_custom_call.1} parent=0
    _
  %s8 = ssub.s32 1, %s6
  %s9 = scalar_select 0, %s8, %s6
  $region1: #{tpu_custom_call.1} parent=0
    #allocation3 [shape = 'u8[4096]{0}', space=vmem, size = 0x1000, scoped, tag = 'input window, operand 0, single buffered']
    #allocation4 [shape = 's32[1]{0}', space=sflag, size = 0x4, scoped, tag = 'scoped memory for tpu_custom_call.1']
    #allocation5 [shape = 's32[1]{0}', space=sflag, size = 0x4, scoped, tag = 'scoped memory for tpu_custom_call.1']
    #allocation6 [shape = 'u8[16384]{0}', space=vmem, size = 0x4000, scoped, tag = 'input window, operand 2, single buffered']
    #allocation7 [shape = 's32[1]{0}', space=sflag, size = 0x4, scoped, tag = 'scoped memory for tpu_custom_call.1']
    #allocation8 [shape = 'u8[4096]{0}', space=vmem, size = 0x1000, scoped, tag = 'output window, operand 0, single buffered']
    #allocation9 [shape = 'u8[8192]{0}', space=vmem, size = 0x2000, scoped, tag = 'output window, operand 1, single buffered']
    #allocation10 [shape = 's32[1]{0}', space=sflag, size = 0x4, scoped, tag = 'scoped memory for tpu_custom_call.1']
    %10 = vsyncpa [#allocation4], 0
    %11 = vsyncpa [#allocation7], 0
    %12 = vsyncpa [#allocation5], 0
    %13 = vsyncpa [#allocation10], 0
    // Predicated region
    $region2: #{tpu_custom_call.1} parent=1 // pred_check
      _
    $region3: #{tpu_custom_call.1} parent=1 // pred_check_branch
      %15 = sbr.rel (0) target = $region5
    $region4: #{tpu_custom_call.1} parent=1 // pred_region
      %s17 = ssub.s32 128, 128
      %18 = vsyncadd [#allocation4], %s17
      %s19 = sshll.u32 [#allocation3], 4
      %s20 = int_to_ptr.vmem [resolvable:$true] %s19
      %25 = dma.hbm_to_vmem [thread:$0]  %s0, 128, %s20, [#allocation4], 64, 64, 4
    $region5: #{tpu_custom_call.1} parent=1 // pred_fallthru
      _
    // Predicated region
    $region6: #{tpu_custom_call.1} parent=1 // pred_check
      _
    $region7: #{tpu_custom_call.1} parent=1 // pred_check_branch
      %27 = sbr.rel (0) target = $region9
    $region8: #{tpu_custom_call.1} parent=1 // pred_region
      _
    $region9: #{tpu_custom_call.1} parent=1 // pred_fallthru
      _
    // Predicated region
    $region10: #{tpu_custom_call.1} parent=1 // pred_check
      _
    $region11: #{tpu_custom_call.1} parent=1 // pred_check_branch
      %29 = sbr.rel (0) target = $region13
    $region12: #{tpu_custom_call.1} parent=1 // pred_region
      %s31 = ssub.s32 512, 512
      %32 = vsyncadd [#allocation7], %s31
      %s33 = sshll.u32 [#allocation6], 4
      %s34 = int_to_ptr.vmem [resolvable:$true] %s33
      %39 = dma.hbm_to_vmem [thread:$0]  %s2, 512, %s34, [#allocation7], 64, 64, 4
    $region13: #{tpu_custom_call.1} parent=1 // pred_fallthru
      _
    // Predicated region
    $region14: #{tpu_custom_call.1} parent=1 // pred_check
      _
    $region15: #{tpu_custom_call.1} parent=1 // pred_check_branch
      %41 = sbr.rel (0) target = $region17
    $region16: #{tpu_custom_call.1} parent=1 // pred_region
      %42 = dma.done [#allocation4], 128
    $region17: #{tpu_custom_call.1} parent=1 // pred_fallthru
      _
    // Predicated region
    $region18: #{tpu_custom_call.1} parent=1 // pred_check
      _
    $region19: #{tpu_custom_call.1} parent=1 // pred_check_branch
      %44 = sbr.rel (0) target = $region21
    $region20: #{tpu_custom_call.1} parent=1 // pred_region
      %45 = dma.done [#allocation7], 512
    $region21: #{tpu_custom_call.1} parent=1 // pred_fallthru
      _
    %p47 = scmp.eq.s32.totalorder 0, 0
    // Predicated region
    $region22: #{tpu_custom_call.1} parent=1 // pred_check
      %p48 = pneg %p47
    $region23: #{tpu_custom_call.1} parent=1 // pred_check_branch
      %50 = sbr.rel (%p48) target = $region25
    $region24: #{tpu_custom_call.1} parent=1 // pred_region
      %v51 = vld [vmem:[#allocation3] sm:$0xf]
      %v52 = vld [vmem:[#allocation3 + $0x4] sm:$0xf]
      %v53 = vunpack.c.l.bf16 %v51
      %v54 = vunpack.c.l.bf16 %v52
      %vm55 = vcmask 523264
      %56 = vst.msk [vmem:[#allocation9] sm:$0xff] %vm55, %v53
      %57 = vst.msk [vmem:[#allocation9 + $0x8] sm:$0xff] %vm55, %v54
      %v58 = vmul.f32 %v53, %v53
      %v59 = vmul.f32 %v54, %v54
      %v60 = vsel %vm55, %v58, 0.0
      %61 = vadd.xlane.f32.xlu0 %v60
      %v62 = vpop.xlane.xlu0 %61
      %v63 = vsel %vm55, %v59, 0.0
      %64 = vadd.xlane.f32.xlu0 %v63
      %v65 = vpop.xlane.xlu0 %64
      %v66 = vrcp.pop 64.0
      %v67 = vmul.f32 %v62, %v66
      %v68 = vmul.f32 %v65, %v66
      %v69 = vadd.f32 %v67, 1e-06
      %v70 = vadd.f32 %v68, 1e-06
      %v71 = vrsqrt.pop %v69
      %v72 = vrsqrt.pop %v70
      %v73 = vmul.f32 %v53, %v71
      %v74 = vmul.f32 %v54, %v72
      %v75 = vld [vmem:[%s1] sm:$0x1]
      %v77 = vlaneseq
      %v78 = vshrl.u32 %v77, 7
      %v79 = vsub.s32 0, %v78
      %v80 = vrot.slane %v75, %v79
      %v82 = vmul.f32 %v73, %v80
      %v83 = vmul.f32 %v74, %v80
      %v84 = vpack.c.bf16 %v83, %v82
      %v86 = vunpack.c.l.b16 %v84
      %v87 = vunpack.c.h.b16 %v84
      %v88 = vpack.c.b16 %v86, %v86
      %v89 = vpack.c.b16 %v87, %v87
      %vm92 = vcmask 519168
      %93 = vst.msk [vmem:[#allocation2] sm:$0xf] %vm92, %v88
      %94 = vst.msk [vmem:[#allocation2 + $0x4] sm:$0xf] %vm92, %v89
    $region25: #{tpu_custom_call.1} parent=1 // pred_fallthru
      _
    %v95 = vld [vmem:[#allocation2] sm:$0xf]
    %v96 = vld [vmem:[#allocation2 + $0x4] sm:$0xf]
    %v97 = vld [vmem:[#allocation6] sm:$0xf]
    %v98 = vld [vmem:[#allocation6 + $0x4] sm:$0xf]
    %v99 = vld [vmem:[#allocation6 + $0x8] sm:$0xf]
    %v100 = vld [vmem:[#allocation6 + $0xc] sm:$0xf]
    %v101 = vld [vmem:[#allocation6 + $0x10] sm:$0xf]
    %v102 = vld [vmem:[#allocation6 + $0x14] sm:$0xf]
    %v103 = vld [vmem:[#allocation6 + $0x18] sm:$0xf]
    %v104 = vld [vmem:[#allocation6 + $0x1c] sm:$0xf]
    %v107 = vunpack.c.l.b16 %v95
    %v108 = vunpack.c.l.b16 %v96
    %v109 = vpack.c.b16 %v108, %v107
    %v118 = vunpack.c.l.b16 %v97
    %v119 = vunpack.c.l.b16 %v98
    %v120 = vunpack.c.l.b16 %v99
    %v121 = vunpack.c.l.b16 %v100
    %v122 = vunpack.c.l.b16 %v101
    %v123 = vunpack.c.l.b16 %v102
    %v124 = vunpack.c.l.b16 %v103
    %v125 = vunpack.c.l.b16 %v104
    %v126 = vpack.c.b16 %v119, %v118
    %v127 = vpack.c.b16 %v121, %v120
    %v128 = vpack.c.b16 %v123, %v122
    %v129 = vpack.c.b16 %v125, %v124
    %vm134 = vcmask 523264
    %v136 = vsel %vm134, %v109, 0
    %138 = vmatprep.subr.bf16.mxu0 0
    %139 = vmatpush1.bf16.msra.mxu0 0
    %140 = vmatprep.subr.bf16.mxu0 0
    %141 = vmatpush1.bf16.msra.mxu0 0
    %142 = vmatprep.subr.bf16.mxu0 0
    %143 = vmatpush1.bf16.msra.mxu0 0
    %144 = vmatprep.subr.bf16.mxu0 0
    %145 = vmatpush1.bf16.msra.mxu0 0
    %146 = vmatprep.subr.bf16.mxu0 0
    %147 = vmatpush1.bf16.msra.mxu0 %v129
    %148 = vmatprep.subr.bf16.mxu0 0
    %149 = vmatpush1.bf16.msra.mxu0 %v128
    %150 = vmatprep.subr.bf16.mxu0 0
    %151 = vmatpush1.bf16.msra.mxu0 %v127
    %152 = vmatprep.subr.bf16.mxu0 0
    %153 = vmatpush1.bf16.msra.mxu0 %v126
    %154 = vmatprep.subr.bf16.mxu0 0
    %155 = vmatpush2.bf16.msra.mxu0 0
    %156 = vmatprep.subr.bf16.mxu0 0
    %157 = vmatpush2.bf16.msra.mxu0 0
    %158 = vmatprep.subr.bf16.mxu0 0
    %159 = vmatpush2.bf16.msra.mxu0 0
    %160 = vmatprep.subr.bf16.mxu0 0
    %161 = vmatpush2.bf16.msra.mxu0 0
    %162 = vmatprep.subr.bf16.mxu0 0
    %163 = vmatpush2.bf16.msra.mxu0 0
    %164 = vmatprep.subr.bf16.mxu0 0
    %165 = vmatpush2.bf16.msra.mxu0 0
    %166 = vmatprep.subr.bf16.mxu0 0
    %167 = vmatpush2.bf16.msra.mxu0 0
    %168 = vmatprep.subr.bf16.mxu0 0
    %169 = vmatpush2.bf16.msra.mxu0 0
    %170 = vmatprep.mubr.bf16.mxu0 0
    %171 = vmatmul.mubr.bf16.gmra.mxu0 %v136
    %v172 = vpop.f32.mrf.mxu0
    %v173 = vadd.f32 0.0, %v172
    %v174 = vpop.f32.mrf.mxu0
    %v175 = vpop.f32.mrf.mxu0
    %v176 = vadd.f32 0.0, %v175
    %v177 = vpop.f32.mrf.mxu0
    %178 = vdwg.mxu0
    %v179 = vpack.c.bf16 %v176, %v173
    %v181 = vunpack.c.l.b16 %v179
    %v182 = vunpack.c.h.b16 %v179
    %v183 = vpack.c.b16 %v181, %v181
    %v184 = vpack.c.b16 %v182, %v182
    %187 = vst [vmem:[#allocation8] sm:$0xf] %v183
    %188 = vst [vmem:[#allocation8 + $0x4] sm:$0xf] %v184
    // Predicated region
    $region26: #{tpu_custom_call.1} parent=1 // pred_check
      _
    $region27: #{tpu_custom_call.1} parent=1 // pred_check_branch
      %190 = sbr.rel (0) target = $region29
    $region28: #{tpu_custom_call.1} parent=1 // pred_region
      %s192 = ssub.s32 128, 128
      %193 = vsyncadd [#allocation5], %s192
      %s194 = sshll.u32 [#allocation8], 4
      %s195 = int_to_ptr.vmem [resolvable:$true] %s194
      %200 = dma.vmem_to_hbm [thread:$0]  %s195, 128, %s3, [#allocation5], 64, 64, 4
    $region29: #{tpu_custom_call.1} parent=1 // pred_fallthru
      _
    // Predicated region
    $region30: #{tpu_custom_call.1} parent=1 // pred_check
      _
    $region31: #{tpu_custom_call.1} parent=1 // pred_check_branch
      %202 = sbr.rel (0) target = $region33
    $region32: #{tpu_custom_call.1} parent=1 // pred_region
      %s204 = ssub.s32 256, 256
      %205 = vsyncadd [#allocation10], %s204
      %s206 = sshll.u32 [#allocation9], 4
      %s207 = int_to_ptr.vmem [resolvable:$true] %s206
      %212 = dma.vmem_to_hbm [thread:$0]  %s207, 256, %s4, [#allocation10], 128, 128, 8
    $region33: #{tpu_custom_call.1} parent=1 // pred_fallthru
      _
    // Predicated region
    $region34: #{tpu_custom_call.1} parent=1 // pred_check
      _
    $region35: #{tpu_custom_call.1} parent=1 // pred_check_branch
      %214 = sbr.rel (0) target = $region37
    $region36: #{tpu_custom_call.1} parent=1 // pred_region
      %215 = dma.done [#allocation5], 128
    $region37: #{tpu_custom_call.1} parent=1 // pred_fallthru
      _
    // Predicated region
    $region38: #{tpu_custom_call.1} parent=1 // pred_check
      _
    $region39: #{tpu_custom_call.1} parent=1 // pred_check_branch
      %217 = sbr.rel (0) target = $region41
    $region40: #{tpu_custom_call.1} parent=1 // pred_region
      %218 = dma.done [#allocation10], 256
    $region41: #{tpu_custom_call.1} parent=1 // pred_fallthru
      _
    %219 = vsyncpa [#allocation4], 1
    %220 = vsyncpa [#allocation7], 1
    %221 = vsyncpa [#allocation5], 1
    %222 = vsyncpa [#allocation10], 1

</llo_original>
